<compile_context>
chip_gen: v6e
topology: v6e:2x2x1
jax: 0.10.0
libtpu: 0.0.40
codegen_flags: <defaults>
</compile_context>

<pallas_src>
import functools

import jax
import jax.numpy as jnp
from jax import lax
from jax.experimental import pallas as pl
from jax.experimental.pallas import tpu as pltpu  # noqa: F401  (TPU backend)

LANES = 128          # tasks live on the lane axis, padded to one vreg width
ROWS_IN = 5          # input slab rows
ROWS_OUT = 2         # output slab rows

ROW_KT, ROW_LAST, ROW_GAMMA, ROW_ALPHA, ROW_ITEMP = 0, 1, 2, 3, 4   # input rows
ROW_W, ROW_CUR = 0, 1                                               # output rows


def _dtp_kernel(in_ref, out_ref, *, num_tasks):
    kt = in_ref[ROW_KT:ROW_KT + 1, :]           # (1, 128)
    last = in_ref[ROW_LAST:ROW_LAST + 1, :]     # (1, 128)
    gamma = in_ref[ROW_GAMMA:ROW_GAMMA + 1, :]  # (1, 128)
    alpha = in_ref[ROW_ALPHA:ROW_ALPHA + 1, :]  # (1, 128) broadcast scalar row
    inv_t = in_ref[ROW_ITEMP:ROW_ITEMP + 1, :]  # (1, 128) broadcast scalar row

    # num_tasks is a static Python int -> this folds to a compile-time constant mask.
    valid = lax.broadcasted_iota(jnp.int32, (1, LANES), 1) < num_tasks

    # EMA of the task KPI.
    cur = alpha * kt + (1.0 - alpha) * last

    # difficulties = (1 - cur_Kt) ** gammas.
    # Padded lanes: cur == 0, gamma == 0 -> pow(1, 0) == 1 (finite, masked out below).
    # NOTE: assumes KPI in [0, 1] like the original module (cur > 1 + non-integer gamma -> NaN).
    difficulties = jnp.power(1.0 - cur, gamma)

    # Softmax logits over the task (lane) axis; multiply by precomputed 1/temperature.
    logits = -difficulties * jnp.log(cur + 1e-6) * inv_t
    logits = jnp.where(valid, logits, -jnp.inf)

    # Numerically stable masked softmax.
    m = jnp.max(logits, axis=-1, keepdims=True)
    e = jnp.where(valid, jnp.exp(logits - m), 0.0)
    denom = jnp.sum(e, axis=-1, keepdims=True)
    weights = e * pl.reciprocal(denom, approx=False)  # exact: keeps 1e-5 tolerance

    # Two lane-dense (1,128) row stores into the (2,128) output slab.
    out_ref[ROW_W:ROW_W + 1, :] = weights
    out_ref[ROW_CUR:ROW_CUR + 1, :] = cur


def dynamic_task_prioritization(Kt, last_Kt, gammas, *, alpha=0.8,
                                temperature=1.0):
    """Returns (task_weights, new_last_Kt), each shaped (num_tasks,) float32."""
    num_tasks = Kt.shape[0]
    assert 1 <= num_tasks <= LANES, "num_tasks larger than one lane tile not supported"

    # Single (5, 128) input slab: rows 0-2 are Kt / last_Kt / gammas (lane-padded with
    # zeros, numerically safe and masked in-kernel), rows 3-4 broadcast alpha and 1/T.
    tasks = jnp.stack([Kt, last_Kt, gammas]).astype(jnp.float32)         # (3, n)
    tasks = jnp.pad(tasks, ((0, 0), (0, LANES - num_tasks)))             # (3, 128)
    params = jnp.broadcast_to(
        jnp.array([[alpha], [1.0 / temperature]], jnp.float32), (2, LANES))
    slab = jnp.concatenate([tasks, params], axis=0)                      # (5, 128)

    cost = pl.CostEstimate(
        flops=12 * LANES,
        transcendentals=4 * LANES,
        bytes_accessed=(ROWS_IN + ROWS_OUT) * LANES * 4,
    )

    out = pl.pallas_call(
        functools.partial(_dtp_kernel, num_tasks=num_tasks),
        out_shape=jax.ShapeDtypeStruct((ROWS_OUT, LANES), jnp.float32),
        in_specs=[pl.BlockSpec((ROWS_IN, LANES), lambda: (0, 0))],
        out_specs=pl.BlockSpec((ROWS_OUT, LANES), lambda: (0, 0)),
        cost_estimate=cost,
    )(slab)

    # In a training loop keep the state in the (rows, 128) slab and skip this slicing;
    # it is done here only to present the module's (num_tasks,) interface.
    # TODO(synk): fuse into the producer of Kt (or leave to XLA) — the standalone
    # pallas_call boundary dominates the ~20 vector ops inside by 10-100x.
    return out[ROW_W, :num_tasks], out[ROW_CUR, :num_tasks]


if __name__ == "__main__":
    num_tasks = 2  # gammas parameter in the module has 2 entries
    alpha = 0.8
    temperature = 1.0

    # Deterministic state / parameter init mirroring __init__:
    last_Kt = jnp.zeros((num_tasks,), jnp.float32)
    gammas = jnp.array([1.0, 0.5], jnp.float32)

    # Deterministic example input Kt in (0, 1)
    key = jax.random.PRNGKey(0)
    Kt = jax.random.uniform(key, (num_tasks,), jnp.float32,
                            minval=0.05, maxval=0.95)

    weights, new_last_Kt = dynamic_task_prioritization(
        Kt, last_Kt, gammas, alpha=alpha, temperature=temperature)
    weights = jax.block_until_ready(weights)
    new_last_Kt = jax.block_until_ready(new_last_Kt)

    # Pure-JAX reference
    cur_ref = alpha * Kt + (1.0 - alpha) * last_Kt
    diff_ref = jnp.power(1.0 - cur_ref, gammas)
    logits_ref = -diff_ref * jnp.log(cur_ref + 1e-6) / temperature
    w_ref = jax.nn.softmax(logits_ref, axis=0)

    assert jnp.allclose(weights, w_ref, atol=1e-5, rtol=1e-5), (weights, w_ref)
    assert jnp.allclose(new_last_Kt, cur_ref, atol=1e-6), (new_last_Kt, cur_ref)

    print("KERNEL_OK")
</pallas_src>

<mosaic_0001>
module attributes {stable_mosaic.version = 11 : i64} {
  func.func @_dtp_kernel(%arg0: memref<5x128xf32, #tpu.memory_space<vmem>>, %arg1: memref<2x128xf32, #tpu.memory_space<vmem>>) attributes {dimension_semantics = [], scalar_prefetch = 0 : i64, scratch_operands = 0 : i64, tpu.core_type = #tpu.core_type<tc>} {
    %c0 = arith.constant 0 : index
    %c0_0 = arith.constant 0 : index
    %0 = vector.load %arg0[%c0, %c0_0] : memref<5x128xf32, #tpu.memory_space<vmem>>, vector<1x128xf32>
    %c1 = arith.constant 1 : index
    %c0_1 = arith.constant 0 : index
    %1 = vector.load %arg0[%c1, %c0_1] : memref<5x128xf32, #tpu.memory_space<vmem>>, vector<1x128xf32>
    %c2 = arith.constant 2 : index
    %c0_2 = arith.constant 0 : index
    %2 = vector.load %arg0[%c2, %c0_2] : memref<5x128xf32, #tpu.memory_space<vmem>>, vector<1x128xf32>
    %c3 = arith.constant 3 : index
    %c0_3 = arith.constant 0 : index
    %3 = vector.load %arg0[%c3, %c0_3] : memref<5x128xf32, #tpu.memory_space<vmem>>, vector<1x128xf32>
    %c4 = arith.constant 4 : index
    %c0_4 = arith.constant 0 : index
    %4 = vector.load %arg0[%c4, %c0_4] : memref<5x128xf32, #tpu.memory_space<vmem>>, vector<1x128xf32>
    %5 = tpu.iota {dimensions = array<i32: 1>} : vector<1x128xi32>
    %c2_i32 = arith.constant 2 : i32
    %6 = vector.broadcast %c2_i32 : i32 to vector<1x128xi32>
    %7 = arith.cmpi slt, %5, %6 : vector<1x128xi32>
    %8 = arith.mulf %3, %0 : vector<1x128xf32>
    %cst = arith.constant 1.000000e+00 : f32
    %9 = vector.broadcast %cst : f32 to vector<1x128xf32>
    %10 = arith.subf %9, %3 : vector<1x128xf32>
    %11 = arith.mulf %10, %1 : vector<1x128xf32>
    %12 = arith.addf %8, %11 : vector<1x128xf32>
    %cst_5 = arith.constant 1.000000e+00 : f32
    %13 = vector.broadcast %cst_5 : f32 to vector<1x128xf32>
    %14 = arith.subf %13, %12 : vector<1x128xf32>
    %15 = math.powf %14, %2 : vector<1x128xf32>
    %cst_6 = arith.constant 0.000000e+00 : f32
    %16 = vector.broadcast %cst_6 : f32 to vector<1x128xf32>
    %17 = arith.subf %16, %15 : vector<1x128xf32>
    %cst_7 = arith.constant 9.99999997E-7 : f32
    %18 = vector.broadcast %cst_7 : f32 to vector<1x128xf32>
    %19 = arith.addf %12, %18 : vector<1x128xf32>
    %20 = math.log %19 : vector<1x128xf32>
    %21 = arith.mulf %17, %20 : vector<1x128xf32>
    %22 = arith.mulf %21, %4 : vector<1x128xf32>
    %cst_8 = arith.constant 0xFF800000 : f32
    %23 = vector.broadcast %cst_8 : f32 to vector<1x128xf32>
    %24 = arith.select %7, %22, %23 : vector<1x128xi1>, vector<1x128xf32>
    %cst_9 = arith.constant dense<0xFF800000> : vector<1xf32>
    %25 = vector.multi_reduction <maximumf>, %24, %cst_9 [1] : vector<1x128xf32> to vector<1xf32>
    %26 = vector.shape_cast %25 : vector<1xf32> to vector<1x1xf32>
    %27 = vector.broadcast %26 : vector<1x1xf32> to vector<1x128xf32>
    %28 = arith.subf %24, %27 : vector<1x128xf32>
    %29 = math.exp %28 : vector<1x128xf32>
    %cst_10 = arith.constant 0.000000e+00 : f32
    %30 = vector.broadcast %cst_10 : f32 to vector<1x128xf32>
    %31 = arith.select %7, %29, %30 : vector<1x128xi1>, vector<1x128xf32>
    %cst_11 = arith.constant dense<0.000000e+00> : vector<1xf32>
    %32 = vector.multi_reduction <add>, %31, %cst_11 [1] : vector<1x128xf32> to vector<1xf32>
    %33 = vector.shape_cast %32 : vector<1xf32> to vector<1x1xf32>
    %34 = tpu.reciprocal %33 : vector<1x1xf32> -> vector<1x1xf32>
    %35 = vector.broadcast %34 : vector<1x1xf32> to vector<1x128xf32>
    %36 = arith.mulf %31, %35 : vector<1x128xf32>
    %c0_12 = arith.constant 0 : index
    %c0_13 = arith.constant 0 : index
    %37 = vector.load %arg1[%c0_12, %c0_13] : memref<2x128xf32, #tpu.memory_space<vmem>>, vector<1x128xf32>
    tpu.vector_store %arg1[%c0_12, %c0_13], %36 {strides = array<i32>} : memref<2x128xf32, #tpu.memory_space<vmem>>, vector<1x128xf32>,
    %c1_14 = arith.constant 1 : index
    %c0_15 = arith.constant 0 : index
    %38 = vector.load %arg1[%c1_14, %c0_15] : memref<2x128xf32, #tpu.memory_space<vmem>>, vector<1x128xf32>
    tpu.vector_store %arg1[%c1_14, %c0_15], %12 {strides = array<i32>} : memref<2x128xf32, #tpu.memory_space<vmem>>, vector<1x128xf32>,
    return
  }
}

</mosaic_0001>

<llo_original>
// kernel: tpu_custom_call.1
$region0: #{tpu_custom_call.1}
  #allocation0 [shape = 'u32[]', space=smem, size = 0x4, offset = 0x4, fixed_abs, tag = 'smem constant byte address 0x4 - core index']
  #allocation1 [shape = 'u32[144,128]{1,0:T(1,128)}', space=vmem, size = 0x12000, scoped, tag = 'internal scratch']
  %s0 = inlined_call_operand.hbm [shape: f32[5,128], index: 0, kind: input, shape index: {}]
  %s1 = inlined_call_operand.hbm [shape: f32[2,128], index: 1, kind: output, shape index: {}]
  %s2 = sld [smem:[#allocation0]]
  $region18: #{tpu_custom_call.1} parent=0
    _
  %s4 = ssub.s32 1, %s2
  %s5 = scalar_select 0, %s4, %s2
  $region1: #{tpu_custom_call.1} parent=0
    #allocation2 [shape = 'u8[4096]{0}', space=vmem, size = 0x1000, scoped, tag = 'input window, operand 0, single buffered']
    #allocation3 [shape = 's32[1]{0}', space=sflag, size = 0x4, scoped, tag = 'scoped memory for tpu_custom_call.1']
    #allocation4 [shape = 's32[1]{0}', space=sflag, size = 0x4, scoped, tag = 'scoped memory for tpu_custom_call.1']
    #allocation5 [shape = 'u8[1024]{0}', space=vmem, size = 0x400, scoped, tag = 'output window, operand 0, single buffered']
    %6 = vsyncpa [#allocation3], 0
    %7 = vsyncpa [#allocation4], 0
    // Predicated region
    $region2: #{tpu_custom_call.1} parent=1 // pred_check
      _
    $region3: #{tpu_custom_call.1} parent=1 // pred_check_branch
      %9 = sbr.rel (0) target = $region5
    $region4: #{tpu_custom_call.1} parent=1 // pred_region
      %s11 = ssub.s32 128, 128
      %12 = vsyncadd [#allocation3], %s11
      %s14 = sshll.u32 [#allocation2], 4
      %s15 = int_to_ptr.vmem [resolvable:$true] %s14
      %17 = dma.hbm_to_vmem [thread:$0]  %s0, 128, %s15, [#allocation3]
    $region5: #{tpu_custom_call.1} parent=1 // pred_fallthru
      _
    // Predicated region
    $region6: #{tpu_custom_call.1} parent=1 // pred_check
      _
    $region7: #{tpu_custom_call.1} parent=1 // pred_check_branch
      %19 = sbr.rel (0) target = $region9
    $region8: #{tpu_custom_call.1} parent=1 // pred_region
      %20 = dma.done [#allocation3], 128
    $region9: #{tpu_custom_call.1} parent=1 // pred_fallthru
      _
    %v21 = vld [vmem:[#allocation2] sm:$0x1]
    %v22 = vld [vmem:[#allocation2 + $0x1] sm:$0x1]
    %v23 = vld [vmem:[#allocation2 + $0x2] sm:$0x1]
    %v24 = vld [vmem:[#allocation2 + $0x3] sm:$0x1]
    %v25 = vld [vmem:[#allocation2 + $0x4] sm:$0x1]
    %v26 = vlaneseq
    %v27 = vand.u32 %v26, 127
    %vm28 = vcmp.lt.s32.totalorder %v27, 2
    %v29 = vmul.f32 %v24, %v21
    %v30 = vsub.f32 1.0, %v24
    %v31 = vmul.f32 %v30, %v22
    %v32 = vadd.f32 %v29, %v31
    %v33 = vsub.f32 1.0, %v32
    %v34 = vpow.f32 %v33, %v23
    %v35 = vsub.f32 0.0, %v34
    %v36 = vadd.f32 %v32, 1e-06
    %v37 = vlog2.pop %v36
    %v38 = vmul.f32 %v37, 0.6931472
    %v39 = vmul.f32 %v35, %v38
    %v40 = vmul.f32 %v39, %v25
    %v41 = vsel %vm28, %v40, -inf
    %vm42 = vcmask 1040384
    %v43 = vsel %vm42, %v41, -inf
    %44 = vmax.xlane.f32.xlu0 %v43
    %v45 = vpop.xlane.xlu0 %44
    %v46 = vsub.f32 %v41, %v45
    %v47 = vmul.f32 %v46, 1.442695
    %v48 = vpow.pop %v47
    %v49 = vsel %vm28, %v48, 0.0
    %v50 = vsel %vm42, %v49, 0.0
    %51 = vadd.xlane.f32.xlu0 %v50
    %v52 = vpop.xlane.xlu0 %51
    %v53 = vrcp.pop %v52
    %v54 = vmul.f32 %v49, %v53
    %55 = vst [vmem:[#allocation5] sm:$0x1] %v54
    %56 = vst [vmem:[#allocation5 + $0x1] sm:$0x1] %v32
    // Predicated region
    $region10: #{tpu_custom_call.1} parent=1 // pred_check
      _
    $region11: #{tpu_custom_call.1} parent=1 // pred_check_branch
      %58 = sbr.rel (0) target = $region13
    $region12: #{tpu_custom_call.1} parent=1 // pred_region
      %s60 = ssub.s32 32, 32
      %61 = vsyncadd [#allocation4], %s60
      %s63 = sshll.u32 [#allocation5], 4
      %s64 = int_to_ptr.vmem [resolvable:$true] %s63
      %66 = dma.vmem_to_hbm [thread:$0]  %s64, 32, %s1, [#allocation4]
    $region13: #{tpu_custom_call.1} parent=1 // pred_fallthru
      _
    // Predicated region
    $region14: #{tpu_custom_call.1} parent=1 // pred_check
      _
    $region15: #{tpu_custom_call.1} parent=1 // pred_check_branch
      %68 = sbr.rel (0) target = $region17
    $region16: #{tpu_custom_call.1} parent=1 // pred_region
      %69 = dma.done [#allocation4], 32
    $region17: #{tpu_custom_call.1} parent=1 // pred_fallthru
      _
    %70 = vsyncpa [#allocation3], 1
    %71 = vsyncpa [#allocation4], 1

</llo_original>
